<compile_context>
chip_gen: v5e
topology: v5e:2x2
jax: 0.10.0
libtpu: 0.0.40
codegen_flags: <defaults>
</compile_context>

<pallas_src>
import jax
import jax.numpy as jnp
from jax.experimental import pallas as pl
from jax.experimental.pallas import tpu as pltpu

# ----------------------- problem sizes (small, deterministic) ----------------
N, CIN, H, W = 2, 4, 16, 16           # input  (N, Cin, H, W)
C0, C1 = 4, 4                         # branch output channels
KH, KW = 3, 3                         # branch-1 kernel
HO, WO = H - (KH - 1), W - (KW - 1)   # min spatial size = branch-1 output
CROP = ((H - HO) // 2, (W - WO) // 2) # center-crop offsets for branch 0
CTOT = C0 + C1
HW = H * W                            # 256 lanes (multiple of 128)
KTAPS = KH * KW                       # 9 taps
CPAD = 8                              # channels rounded up to a sublane group
TAP_SHIFTS = tuple(dy * W + dx for dy in range(KH) for dx in range(KW))


def concat_kernel(x_ref, w_ref, b_ref, o_ref, col_ref):
    """Fused (1x1 || 3x3 valid) conv + channel concat, one matmul per image.

    x_ref  : VMEM (N, CIN, HW)           flattened images, lane-dense
    w_ref  : VMEM (CTOT, KTAPS*CPAD)     combined weight matrix (im2col layout)
    b_ref  : VMEM (CTOT, 1)              combined bias
    o_ref  : VMEM (N, CTOT, HW)          lane-dense output (valid = HOxWO corner)
    col_ref: VMEM (KTAPS*CPAD, HW)       im2col scratch
    """
    # Zero once so the padded-channel rows contribute exactly 0 to the matmul.
    col_ref[...] = jnp.zeros_like(col_ref)
    w = w_ref[...]                         # hoisted: loaded once
    b = b_ref[...]
    for n in range(N):                     # N=2, fully unrolled
        xf = x_ref[n]                      # (CIN, HW)
        # im2col: tap (dy,dx) at output pixel p = y*W + x equals
        # xf[:, p + dy*W + dx]; realized as a lane rotation (roll by -shift).
        # Wrapped lanes only land at positions the wrapper crops away
        # (p + shift <= HW-1 for every valid p), so no masking is needed.
        for t, s in enumerate(TAP_SHIFTS):
            rolled = xf if s == 0 else pltpu.roll(xf, shift=HW - s, axis=1)
            col_ref[pl.ds(t * CPAD, CIN), :] = rolled     # aligned sublane base
        o_ref[n] = (
            jnp.dot(w, col_ref[...], preferred_element_type=jnp.float32) + b
        )


def concat_forward(x, w0, b0, w1, b1):
    """x: (N, CIN, H, W) f32 -> (N, C0+C1, HO, WO) f32."""
    # Pack both branches into one (CTOT, KTAPS*CPAD) weight matrix on the
    # im2col layout (tap-major, channel-minor, channels zero-padded to CPAD).
    w1_t = jnp.transpose(w1, (0, 2, 3, 1)).reshape(C1, KTAPS, CIN)
    wfull = jnp.zeros((CTOT, KTAPS, CPAD), jnp.float32)
    wfull = wfull.at[C0:, :, :CIN].set(w1_t)
    center = (KH // 2) * KW + (KW // 2)   # tap (1,1) == branch-0 center crop
    wfull = wfull.at[:C0, center, :CIN].set(w0)
    wc = wfull.reshape(CTOT, KTAPS * CPAD)               # (8, 72)
    bc = jnp.concatenate([b0, b1], axis=0)[:, None]      # (8, 1)

    xf = x.reshape(N, CIN, HW)                           # lane-dense input

    out_flat = pl.pallas_call(
        concat_kernel,
        out_shape=jax.ShapeDtypeStruct((N, CTOT, HW), jnp.float32),
        in_specs=[
            pl.BlockSpec(memory_space=pltpu.MemorySpace.VMEM),
            pl.BlockSpec(memory_space=pltpu.MemorySpace.VMEM),
            pl.BlockSpec(memory_space=pltpu.MemorySpace.VMEM),
        ],
        out_specs=pl.BlockSpec(memory_space=pltpu.MemorySpace.VMEM),
        scratch_shapes=[pltpu.VMEM((KTAPS * CPAD, HW), jnp.float32)],
    )(xf, wc, bc)

    # Layout plumbing only: the valid output is the top-left HOxWO corner of
    # the HxW lane grid.
    return out_flat.reshape(N, CTOT, H, W)[:, :, :HO, :WO]


def reference(x, w0, b0, w1, b1):
    """Plain-JAX reference replicating the PyTorch Concat forward."""
    out0 = jnp.einsum("oc,nchw->nohw", w0, x) + b0[None, :, None, None]
    out1 = jax.lax.conv_general_dilated(
        x, w1, window_strides=(1, 1), padding="VALID",
        dimension_numbers=("NCHW", "OIHW", "NCHW"))
    out1 = out1 + b1[None, :, None, None]
    dy, dx = CROP
    out0c = out0[:, :, dy:dy + HO, dx:dx + WO]   # center-crop to min shape
    return jnp.concatenate([out0c, out1], axis=1)  # torch.cat(dim=1)


if __name__ == "__main__":
    key = jax.random.PRNGKey(0)
    kx, k0, kb0, k1, kb1 = jax.random.split(key, 5)
    x = jax.random.normal(kx, (N, CIN, H, W), dtype=jnp.float32)
    w0 = jax.random.normal(k0, (C0, CIN), dtype=jnp.float32) * 0.1
    b0 = jax.random.normal(kb0, (C0,), dtype=jnp.float32) * 0.1
    w1 = jax.random.normal(k1, (C1, CIN, KH, KW), dtype=jnp.float32) * 0.1
    b1 = jax.random.normal(kb1, (C1,), dtype=jnp.float32) * 0.1

    out = jax.block_until_ready(concat_forward(x, w0, b0, w1, b1))
    ref = jax.block_until_ready(reference(x, w0, b0, w1, b1))

    assert out.shape == (N, CTOT, HO, WO), out.shape
    assert jnp.allclose(out, ref, atol=1e-4, rtol=1e-4), \
        float(jnp.max(jnp.abs(out - ref)))
    print("KERNEL_OK")
</pallas_src>

<mosaic_0001>
module attributes {stable_mosaic.version = 11 : i64} {
  func.func @concat_kernel(%arg0: memref<2x4x256xf32, #tpu.memory_space<vmem>>, %arg1: memref<8x72xf32, #tpu.memory_space<vmem>>, %arg2: memref<8x1xf32, #tpu.memory_space<vmem>>, %arg3: memref<2x8x256xf32, #tpu.memory_space<vmem>>, %arg4: memref<72x256xf32, #tpu.memory_space<vmem>>) attributes {dimension_semantics = [], scalar_prefetch = 0 : i64, scratch_operands = 1 : i64, tpu.core_type = #tpu.core_type<tc>} {
    %cst = arith.constant 0.000000e+00 : f32
    %0 = vector.broadcast %cst : f32 to vector<72x256xf32>
    %c0 = arith.constant 0 : index
    %c0_0 = arith.constant 0 : index
    %1 = vector.load %arg4[%c0, %c0_0] : memref<72x256xf32, #tpu.memory_space<vmem>>, vector<72x256xf32>
    tpu.vector_store %arg4[%c0, %c0_0], %0 {strides = array<i32>} : memref<72x256xf32, #tpu.memory_space<vmem>>, vector<72x256xf32>,
    %c0_1 = arith.constant 0 : index
    %c0_2 = arith.constant 0 : index
    %2 = vector.load %arg1[%c0_1, %c0_2] : memref<8x72xf32, #tpu.memory_space<vmem>>, vector<8x72xf32>
    %c0_3 = arith.constant 0 : index
    %c0_4 = arith.constant 0 : index
    %3 = vector.load %arg2[%c0_3, %c0_4] : memref<8x1xf32, #tpu.memory_space<vmem>>, vector<8x1xf32>
    %c0_5 = arith.constant 0 : index
    %c0_6 = arith.constant 0 : index
    %c0_7 = arith.constant 0 : index
    %4 = vector.load %arg0[%c0_5, %c0_6, %c0_7] : memref<2x4x256xf32, #tpu.memory_space<vmem>>, vector<1x4x256xf32>
    %5 = vector.shape_cast %4 : vector<1x4x256xf32> to vector<4x256xf32>
    %c0_8 = arith.constant 0 : index
    %c0_9 = arith.constant 0 : index
    %6 = vector.load %arg4[%c0_8, %c0_9] : memref<72x256xf32, #tpu.memory_space<vmem>>, vector<4x256xf32>
    tpu.vector_store %arg4[%c0_8, %c0_9], %5 {strides = array<i32>} : memref<72x256xf32, #tpu.memory_space<vmem>>, vector<4x256xf32>,
    %c255_i32 = arith.constant 255 : i32
    %7 = tpu.dynamic_rotate %5 by %c255_i32 dim 1 : vector<4x256xf32>, i32 -> vector<4x256xf32>
    %c8 = arith.constant 8 : index
    %c0_10 = arith.constant 0 : index
    %8 = vector.load %arg4[%c8, %c0_10] : memref<72x256xf32, #tpu.memory_space<vmem>>, vector<4x256xf32>
    tpu.vector_store %arg4[%c8, %c0_10], %7 {strides = array<i32>} : memref<72x256xf32, #tpu.memory_space<vmem>>, vector<4x256xf32>,
    %c254_i32 = arith.constant 254 : i32
    %9 = tpu.dynamic_rotate %5 by %c254_i32 dim 1 : vector<4x256xf32>, i32 -> vector<4x256xf32>
    %c16 = arith.constant 16 : index
    %c0_11 = arith.constant 0 : index
    %10 = vector.load %arg4[%c16, %c0_11] : memref<72x256xf32, #tpu.memory_space<vmem>>, vector<4x256xf32>
    tpu.vector_store %arg4[%c16, %c0_11], %9 {strides = array<i32>} : memref<72x256xf32, #tpu.memory_space<vmem>>, vector<4x256xf32>,
    %c240_i32 = arith.constant 240 : i32
    %11 = tpu.dynamic_rotate %5 by %c240_i32 dim 1 : vector<4x256xf32>, i32 -> vector<4x256xf32>
    %c24 = arith.constant 24 : index
    %c0_12 = arith.constant 0 : index
    %12 = vector.load %arg4[%c24, %c0_12] : memref<72x256xf32, #tpu.memory_space<vmem>>, vector<4x256xf32>
    tpu.vector_store %arg4[%c24, %c0_12], %11 {strides = array<i32>} : memref<72x256xf32, #tpu.memory_space<vmem>>, vector<4x256xf32>,
    %c239_i32 = arith.constant 239 : i32
    %13 = tpu.dynamic_rotate %5 by %c239_i32 dim 1 : vector<4x256xf32>, i32 -> vector<4x256xf32>
    %c32 = arith.constant 32 : index
    %c0_13 = arith.constant 0 : index
    %14 = vector.load %arg4[%c32, %c0_13] : memref<72x256xf32, #tpu.memory_space<vmem>>, vector<4x256xf32>
    tpu.vector_store %arg4[%c32, %c0_13], %13 {strides = array<i32>} : memref<72x256xf32, #tpu.memory_space<vmem>>, vector<4x256xf32>,
    %c238_i32 = arith.constant 238 : i32
    %15 = tpu.dynamic_rotate %5 by %c238_i32 dim 1 : vector<4x256xf32>, i32 -> vector<4x256xf32>
    %c40 = arith.constant 40 : index
    %c0_14 = arith.constant 0 : index
    %16 = vector.load %arg4[%c40, %c0_14] : memref<72x256xf32, #tpu.memory_space<vmem>>, vector<4x256xf32>
    tpu.vector_store %arg4[%c40, %c0_14], %15 {strides = array<i32>} : memref<72x256xf32, #tpu.memory_space<vmem>>, vector<4x256xf32>,
    %c224_i32 = arith.constant 224 : i32
    %17 = tpu.dynamic_rotate %5 by %c224_i32 dim 1 : vector<4x256xf32>, i32 -> vector<4x256xf32>
    %c48 = arith.constant 48 : index
    %c0_15 = arith.constant 0 : index
    %18 = vector.load %arg4[%c48, %c0_15] : memref<72x256xf32, #tpu.memory_space<vmem>>, vector<4x256xf32>
    tpu.vector_store %arg4[%c48, %c0_15], %17 {strides = array<i32>} : memref<72x256xf32, #tpu.memory_space<vmem>>, vector<4x256xf32>,
    %c223_i32 = arith.constant 223 : i32
    %19 = tpu.dynamic_rotate %5 by %c223_i32 dim 1 : vector<4x256xf32>, i32 -> vector<4x256xf32>
    %c56 = arith.constant 56 : index
    %c0_16 = arith.constant 0 : index
    %20 = vector.load %arg4[%c56, %c0_16] : memref<72x256xf32, #tpu.memory_space<vmem>>, vector<4x256xf32>
    tpu.vector_store %arg4[%c56, %c0_16], %19 {strides = array<i32>} : memref<72x256xf32, #tpu.memory_space<vmem>>, vector<4x256xf32>,
    %c222_i32 = arith.constant 222 : i32
    %21 = tpu.dynamic_rotate %5 by %c222_i32 dim 1 : vector<4x256xf32>, i32 -> vector<4x256xf32>
    %c64 = arith.constant 64 : index
    %c0_17 = arith.constant 0 : index
    %22 = vector.load %arg4[%c64, %c0_17] : memref<72x256xf32, #tpu.memory_space<vmem>>, vector<4x256xf32>
    tpu.vector_store %arg4[%c64, %c0_17], %21 {strides = array<i32>} : memref<72x256xf32, #tpu.memory_space<vmem>>, vector<4x256xf32>,
    %c0_18 = arith.constant 0 : index
    %c0_19 = arith.constant 0 : index
    %23 = vector.load %arg4[%c0_18, %c0_19] : memref<72x256xf32, #tpu.memory_space<vmem>>, vector<72x256xf32>
    %cst_20 = arith.constant dense<0.000000e+00> : vector<8x256xf32>
    %24 = tpu.matmul %2, %23, %cst_20 {dimension_numbers = #tpu.dot_dimension_numbers<[1], [0], [0], [1], [0, 0, 1, 1], [], []>} : vector<8x72xf32>, vector<72x256xf32>, vector<8x256xf32> -> vector<8x256xf32>
    %25 = vector.broadcast %3 : vector<8x1xf32> to vector<8x256xf32>
    %26 = arith.addf %24, %25 : vector<8x256xf32>
    %c0_21 = arith.constant 0 : index
    %c0_22 = arith.constant 0 : index
    %c0_23 = arith.constant 0 : index
    %27 = vector.load %arg3[%c0_21, %c0_22, %c0_23] : memref<2x8x256xf32, #tpu.memory_space<vmem>>, vector<1x8x256xf32>
    %28 = vector.shape_cast %27 : vector<1x8x256xf32> to vector<8x256xf32>
    %29 = vector.shape_cast %26 : vector<8x256xf32> to vector<1x8x256xf32>
    tpu.vector_store %arg3[%c0_21, %c0_22, %c0_23], %29 {strides = array<i32>} : memref<2x8x256xf32, #tpu.memory_space<vmem>>, vector<1x8x256xf32>,
    %c1 = arith.constant 1 : index
    %c0_24 = arith.constant 0 : index
    %c0_25 = arith.constant 0 : index
    %30 = vector.load %arg0[%c1, %c0_24, %c0_25] : memref<2x4x256xf32, #tpu.memory_space<vmem>>, vector<1x4x256xf32>
    %31 = vector.shape_cast %30 : vector<1x4x256xf32> to vector<4x256xf32>
    %c0_26 = arith.constant 0 : index
    %c0_27 = arith.constant 0 : index
    %32 = vector.load %arg4[%c0_26, %c0_27] : memref<72x256xf32, #tpu.memory_space<vmem>>, vector<4x256xf32>
    tpu.vector_store %arg4[%c0_26, %c0_27], %31 {strides = array<i32>} : memref<72x256xf32, #tpu.memory_space<vmem>>, vector<4x256xf32>,
    %c255_i32_28 = arith.constant 255 : i32
    %33 = tpu.dynamic_rotate %31 by %c255_i32_28 dim 1 : vector<4x256xf32>, i32 -> vector<4x256xf32>
    %c8_29 = arith.constant 8 : index
    %c0_30 = arith.constant 0 : index
    %34 = vector.load %arg4[%c8_29, %c0_30] : memref<72x256xf32, #tpu.memory_space<vmem>>, vector<4x256xf32>
    tpu.vector_store %arg4[%c8_29, %c0_30], %33 {strides = array<i32>} : memref<72x256xf32, #tpu.memory_space<vmem>>, vector<4x256xf32>,
    %c254_i32_31 = arith.constant 254 : i32
    %35 = tpu.dynamic_rotate %31 by %c254_i32_31 dim 1 : vector<4x256xf32>, i32 -> vector<4x256xf32>
    %c16_32 = arith.constant 16 : index
    %c0_33 = arith.constant 0 : index
    %36 = vector.load %arg4[%c16_32, %c0_33] : memref<72x256xf32, #tpu.memory_space<vmem>>, vector<4x256xf32>
    tpu.vector_store %arg4[%c16_32, %c0_33], %35 {strides = array<i32>} : memref<72x256xf32, #tpu.memory_space<vmem>>, vector<4x256xf32>,
    %c240_i32_34 = arith.constant 240 : i32
    %37 = tpu.dynamic_rotate %31 by %c240_i32_34 dim 1 : vector<4x256xf32>, i32 -> vector<4x256xf32>
    %c24_35 = arith.constant 24 : index
    %c0_36 = arith.constant 0 : index
    %38 = vector.load %arg4[%c24_35, %c0_36] : memref<72x256xf32, #tpu.memory_space<vmem>>, vector<4x256xf32>
    tpu.vector_store %arg4[%c24_35, %c0_36], %37 {strides = array<i32>} : memref<72x256xf32, #tpu.memory_space<vmem>>, vector<4x256xf32>,
    %c239_i32_37 = arith.constant 239 : i32
    %39 = tpu.dynamic_rotate %31 by %c239_i32_37 dim 1 : vector<4x256xf32>, i32 -> vector<4x256xf32>
    %c32_38 = arith.constant 32 : index
    %c0_39 = arith.constant 0 : index
    %40 = vector.load %arg4[%c32_38, %c0_39] : memref<72x256xf32, #tpu.memory_space<vmem>>, vector<4x256xf32>
    tpu.vector_store %arg4[%c32_38, %c0_39], %39 {strides = array<i32>} : memref<72x256xf32, #tpu.memory_space<vmem>>, vector<4x256xf32>,
    %c238_i32_40 = arith.constant 238 : i32
    %41 = tpu.dynamic_rotate %31 by %c238_i32_40 dim 1 : vector<4x256xf32>, i32 -> vector<4x256xf32>
    %c40_41 = arith.constant 40 : index
    %c0_42 = arith.constant 0 : index
    %42 = vector.load %arg4[%c40_41, %c0_42] : memref<72x256xf32, #tpu.memory_space<vmem>>, vector<4x256xf32>
    tpu.vector_store %arg4[%c40_41, %c0_42], %41 {strides = array<i32>} : memref<72x256xf32, #tpu.memory_space<vmem>>, vector<4x256xf32>,
    %c224_i32_43 = arith.constant 224 : i32
    %43 = tpu.dynamic_rotate %31 by %c224_i32_43 dim 1 : vector<4x256xf32>, i32 -> vector<4x256xf32>
    %c48_44 = arith.constant 48 : index
    %c0_45 = arith.constant 0 : index
    %44 = vector.load %arg4[%c48_44, %c0_45] : memref<72x256xf32, #tpu.memory_space<vmem>>, vector<4x256xf32>
    tpu.vector_store %arg4[%c48_44, %c0_45], %43 {strides = array<i32>} : memref<72x256xf32, #tpu.memory_space<vmem>>, vector<4x256xf32>,
    %c223_i32_46 = arith.constant 223 : i32
    %45 = tpu.dynamic_rotate %31 by %c223_i32_46 dim 1 : vector<4x256xf32>, i32 -> vector<4x256xf32>
    %c56_47 = arith.constant 56 : index
    %c0_48 = arith.constant 0 : index
    %46 = vector.load %arg4[%c56_47, %c0_48] : memref<72x256xf32, #tpu.memory_space<vmem>>, vector<4x256xf32>
    tpu.vector_store %arg4[%c56_47, %c0_48], %45 {strides = array<i32>} : memref<72x256xf32, #tpu.memory_space<vmem>>, vector<4x256xf32>,
    %c222_i32_49 = arith.constant 222 : i32
    %47 = tpu.dynamic_rotate %31 by %c222_i32_49 dim 1 : vector<4x256xf32>, i32 -> vector<4x256xf32>
    %c64_50 = arith.constant 64 : index
    %c0_51 = arith.constant 0 : index
    %48 = vector.load %arg4[%c64_50, %c0_51] : memref<72x256xf32, #tpu.memory_space<vmem>>, vector<4x256xf32>
    tpu.vector_store %arg4[%c64_50, %c0_51], %47 {strides = array<i32>} : memref<72x256xf32, #tpu.memory_space<vmem>>, vector<4x256xf32>,
    %c0_52 = arith.constant 0 : index
    %c0_53 = arith.constant 0 : index
    %49 = vector.load %arg4[%c0_52, %c0_53] : memref<72x256xf32, #tpu.memory_space<vmem>>, vector<72x256xf32>
    %cst_54 = arith.constant dense<0.000000e+00> : vector<8x256xf32>
    %50 = tpu.matmul %2, %49, %cst_54 {dimension_numbers = #tpu.dot_dimension_numbers<[1], [0], [0], [1], [0, 0, 1, 1], [], []>} : vector<8x72xf32>, vector<72x256xf32>, vector<8x256xf32> -> vector<8x256xf32>
    %51 = vector.broadcast %3 : vector<8x1xf32> to vector<8x256xf32>
    %52 = arith.addf %50, %51 : vector<8x256xf32>
    %c1_55 = arith.constant 1 : index
    %c0_56 = arith.constant 0 : index
    %c0_57 = arith.constant 0 : index
    %53 = vector.load %arg3[%c1_55, %c0_56, %c0_57] : memref<2x8x256xf32, #tpu.memory_space<vmem>>, vector<1x8x256xf32>
    %54 = vector.shape_cast %53 : vector<1x8x256xf32> to vector<8x256xf32>
    %55 = vector.shape_cast %52 : vector<8x256xf32> to vector<1x8x256xf32>
    tpu.vector_store %arg3[%c1_55, %c0_56, %c0_57], %55 {strides = array<i32>} : memref<2x8x256xf32, #tpu.memory_space<vmem>>, vector<1x8x256xf32>,
    return
  }
}

</mosaic_0001>

<llo_original>
// kernel: tpu_custom_call.1
$region0: #{tpu_custom_call.1}
  #allocation0 [shape = 'u32[]', space=smem, size = 0x4, offset = 0x4, fixed_abs, tag = 'smem constant byte address 0x4 - core index']
  #allocation1 [shape = 'u32[72,128]{1,0:T(1,128)}', space=vmem, size = 0x9000, scoped, tag = 'internal scratch']
  #allocation2 [shape = 'f32[72,256]{1,0:T(8,128)}', space=vmem, size = 0x12000, scoped, tag = 'scratch operand']
  %s0 = inlined_call_operand.hbm [shape: f32[2,4,256], index: 0, kind: input, shape index: {}]
  %s1 = inlined_call_operand.vmem [shape: f32[8,72], index: 1, kind: input, shape index: {}]
  %s2 = inlined_call_operand.vmem [shape: f32[8,1], index: 2, kind: input, shape index: {}]
  %s3 = inlined_call_operand.hbm [shape: f32[2,8,256], index: 3, kind: output, shape index: {}]
  %s4 = sld [smem:[#allocation0]]
  $region26: #{tpu_custom_call.1} parent=0
    _
  %s6 = ssub.s32 1, %s4
  %s7 = scalar_select 0, %s6, %s4
  $region1: #{tpu_custom_call.1} parent=0
    #allocation3 [shape = 'u8[8192]{0}', space=vmem, size = 0x2000, scoped, tag = 'input window, operand 0, single buffered']
    #allocation4 [shape = 's32[1]{0}', space=sflag, size = 0x4, scoped, tag = 'scoped memory for tpu_custom_call.1']
    #allocation5 [shape = 's32[1]{0}', space=sflag, size = 0x4, scoped, tag = 'scoped memory for tpu_custom_call.1']
    #allocation6 [shape = 'u8[16384]{0}', space=vmem, size = 0x4000, scoped, tag = 'output window, operand 0, single buffered']
    %8 = vsyncpa [#allocation4], 0
    %9 = vsyncpa [#allocation5], 0
    // Predicated region
    $region2: #{tpu_custom_call.1} parent=1 // pred_check
      _
    $region3: #{tpu_custom_call.1} parent=1 // pred_check_branch
      %11 = sbr.rel (0) target = $region5
    $region4: #{tpu_custom_call.1} parent=1 // pred_region
      %13 = vsyncadd [#allocation4], 0
      %s14 = sshll.u32 %s0, 4
      %s15 = int_to_ptr.hbm [resolvable:$true] %s14
      %s16 = sshll.u32 [#allocation3], 4
      %s17 = int_to_ptr.vmem [resolvable:$true] %s16
      %22 = dma.hbm_to_vmem [thread:$0]  %s15, 256, %s17, [#allocation4], 128, 128, 8
    $region5: #{tpu_custom_call.1} parent=1 // pred_fallthru
      _
    // Predicated region
    $region6: #{tpu_custom_call.1} parent=1 // pred_check
      _
    $region7: #{tpu_custom_call.1} parent=1 // pred_check_branch
      %24 = sbr.rel (0) target = $region9
    $region8: #{tpu_custom_call.1} parent=1 // pred_region
      _
    $region9: #{tpu_custom_call.1} parent=1 // pred_fallthru
      _
    // Predicated region
    $region10: #{tpu_custom_call.1} parent=1 // pred_check
      _
    $region11: #{tpu_custom_call.1} parent=1 // pred_check_branch
      %26 = sbr.rel (0) target = $region13
    $region12: #{tpu_custom_call.1} parent=1 // pred_region
      _
    $region13: #{tpu_custom_call.1} parent=1 // pred_fallthru
      _
    // Predicated region
    $region14: #{tpu_custom_call.1} parent=1 // pred_check
      _
    $region15: #{tpu_custom_call.1} parent=1 // pred_check_branch
      %28 = sbr.rel (0) target = $region17
    $region16: #{tpu_custom_call.1} parent=1 // pred_region
      %30 = dma.done [#allocation4], 256
    $region17: #{tpu_custom_call.1} parent=1 // pred_fallthru
      _
    %31 = vst [vmem:[#allocation2] sm:$0xff] 0.0
    %32 = vst [vmem:[#allocation2 + $0x8] sm:$0xff] 0.0
    %33 = vst [vmem:[#allocation2 + $0x10] sm:$0xff] 0.0
    %34 = vst [vmem:[#allocation2 + $0x18] sm:$0xff] 0.0
    %35 = vst [vmem:[#allocation2 + $0x20] sm:$0xff] 0.0
    %36 = vst [vmem:[#allocation2 + $0x28] sm:$0xff] 0.0
    %37 = vst [vmem:[#allocation2 + $0x30] sm:$0xff] 0.0
    %38 = vst [vmem:[#allocation2 + $0x38] sm:$0xff] 0.0
    %39 = vst [vmem:[#allocation2 + $0x40] sm:$0xff] 0.0
    %40 = vst [vmem:[#allocation2 + $0x48] sm:$0xff] 0.0
    %41 = vst [vmem:[#allocation2 + $0x50] sm:$0xff] 0.0
    %42 = vst [vmem:[#allocation2 + $0x58] sm:$0xff] 0.0
    %43 = vst [vmem:[#allocation2 + $0x60] sm:$0xff] 0.0
    %44 = vst [vmem:[#allocation2 + $0x68] sm:$0xff] 0.0
    %45 = vst [vmem:[#allocation2 + $0x70] sm:$0xff] 0.0
    %46 = vst [vmem:[#allocation2 + $0x78] sm:$0xff] 0.0
    %47 = vst [vmem:[#allocation2 + $0x80] sm:$0xff] 0.0
    %48 = vst [vmem:[#allocation2 + $0x88] sm:$0xff] 0.0
    %v49 = vld [vmem:[%s1] sm:$0xff]
    %v50 = vld [vmem:[%s2] sm:$0xff]
    %v51 = vld [vmem:[#allocation3] sm:$0xff]
    %53 = vst [vmem:[#allocation1] ss:$2 sm:$0xff] %v51
    %v54 = vld.sshfl [vmem:[#allocation1] sm:$0xff pattern:$0x75316420]
    %v55 = vld.sshfl [vmem:[#allocation1 + $0x8] sm:$0xff pattern:$0x75316420]
    %58 = vst [vmem:[#allocation2] sm:$0xf] %v54
    %59 = vst [vmem:[#allocation2 + $0x8] sm:$0xf] %v55
    %60 = vst [vmem:[#allocation1] ss:$2 sm:$0xff] %v51
    %v61 = vld.sshfl [vmem:[#allocation1] sm:$0xff pattern:$0x75316420]
    %v62 = vld.sshfl [vmem:[#allocation1 + $0x8] sm:$0xff pattern:$0x75316420]
    %65 = vrot.lane.b32.xlu0 %v61, 127
    %v66 = vpop.permute.xlu0 %65
    %67 = vrot.lane.b32.xlu0 %v62, 127
    %v68 = vpop.permute.xlu0 %67
    %v69 = vlaneseq
    %v70 = vand.u32 %v69, 127
    %vm71 = vcmp.lt.s32.totalorder %v70, 127
    %v72 = vsel %vm71, %v66, %v68
    %v73 = vsel %vm71, %v68, %v66
    %74 = vst [vmem:[#allocation2 + $0x10] sm:$0xf] %v72
    %75 = vst [vmem:[#allocation2 + $0x18] sm:$0xf] %v73
    %76 = vst [vmem:[#allocation1] ss:$2 sm:$0xff] %v51
    %v77 = vld.sshfl [vmem:[#allocation1] sm:$0xff pattern:$0x75316420]
    %v78 = vld.sshfl [vmem:[#allocation1 + $0x8] sm:$0xff pattern:$0x75316420]
    %81 = vrot.lane.b32.xlu0 %v77, 126
    %v82 = vpop.permute.xlu0 %81
    %83 = vrot.lane.b32.xlu0 %v78, 126
    %v84 = vpop.permute.xlu0 %83
    %vm85 = vcmp.lt.s32.totalorder %v70, 126
    %v86 = vsel %vm85, %v82, %v84
    %v87 = vsel %vm85, %v84, %v82
    %88 = vst [vmem:[#allocation2 + $0x20] sm:$0xf] %v86
    %89 = vst [vmem:[#allocation2 + $0x28] sm:$0xf] %v87
    %90 = vst [vmem:[#allocation1] ss:$2 sm:$0xff] %v51
    %v91 = vld.sshfl [vmem:[#allocation1] sm:$0xff pattern:$0x75316420]
    %v92 = vld.sshfl [vmem:[#allocation1 + $0x8] sm:$0xff pattern:$0x75316420]
    %95 = vrot.lane.b32.xlu0 %v91, 112
    %v96 = vpop.permute.xlu0 %95
    %97 = vrot.lane.b32.xlu0 %v92, 112
    %v98 = vpop.permute.xlu0 %97
    %vm99 = vcmp.lt.s32.totalorder %v70, 112
    %v100 = vsel %vm99, %v96, %v98
    %v101 = vsel %vm99, %v98, %v96
    %102 = vst [vmem:[#allocation2 + $0x30] sm:$0xf] %v100
    %103 = vst [vmem:[#allocation2 + $0x38] sm:$0xf] %v101
    %104 = vst [vmem:[#allocation1] ss:$2 sm:$0xff] %v51
    %v105 = vld.sshfl [vmem:[#allocation1] sm:$0xff pattern:$0x75316420]
    %v106 = vld.sshfl [vmem:[#allocation1 + $0x8] sm:$0xff pattern:$0x75316420]
    %109 = vrot.lane.b32.xlu0 %v105, 111
    %v110 = vpop.permute.xlu0 %109
    %111 = vrot.lane.b32.xlu0 %v106, 111
    %v112 = vpop.permute.xlu0 %111
    %vm113 = vcmp.lt.s32.totalorder %v70, 111
    %v114 = vsel %vm113, %v110, %v112
    %v115 = vsel %vm113, %v112, %v110
    %116 = vst [vmem:[#allocation2 + $0x40] sm:$0xf] %v114
    %117 = vst [vmem:[#allocation2 + $0x48] sm:$0xf] %v115
    %118 = vst [vmem:[#allocation1] ss:$2 sm:$0xff] %v51
    %v119 = vld.sshfl [vmem:[#allocation1] sm:$0xff pattern:$0x75316420]
    %v120 = vld.sshfl [vmem:[#allocation1 + $0x8] sm:$0xff pattern:$0x75316420]
    %123 = vrot.lane.b32.xlu0 %v119, 110
    %v124 = vpop.permute.xlu0 %123
    %125 = vrot.lane.b32.xlu0 %v120, 110
    %v126 = vpop.permute.xlu0 %125
    %vm127 = vcmp.lt.s32.totalorder %v70, 110
    %v128 = vsel %vm127, %v124, %v126
    %v129 = vsel %vm127, %v126, %v124
    %130 = vst [vmem:[#allocation2 + $0x50] sm:$0xf] %v128
    %131 = vst [vmem:[#allocation2 + $0x58] sm:$0xf] %v129
    %132 = vst [vmem:[#allocation1] ss:$2 sm:$0xff] %v51
    %v133 = vld.sshfl [vmem:[#allocation1] sm:$0xff pattern:$0x75316420]
    %v134 = vld.sshfl [vmem:[#allocation1 + $0x8] sm:$0xff pattern:$0x75316420]
    %137 = vrot.lane.b32.xlu0 %v133, 96
    %v138 = vpop.permute.xlu0 %137
    %139 = vrot.lane.b32.xlu0 %v134, 96
    %v140 = vpop.permute.xlu0 %139
    %vm141 = vcmp.lt.s32.totalorder %v70, 96
    %v142 = vsel %vm141, %v138, %v140
    %v143 = vsel %vm141, %v140, %v138
    %144 = vst [vmem:[#allocation2 + $0x60] sm:$0xf] %v142
    %145 = vst [vmem:[#allocation2 + $0x68] sm:$0xf] %v143
    %146 = vst [vmem:[#allocation1] ss:$2 sm:$0xff] %v51
    %v147 = vld.sshfl [vmem:[#allocation1] sm:$0xff pattern:$0x75316420]
    %v148 = vld.sshfl [vmem:[#allocation1 + $0x8] sm:$0xff pattern:$0x75316420]
    %151 = vrot.lane.b32.xlu0 %v147, 95
    %v152 = vpop.permute.xlu0 %151
    %153 = vrot.lane.b32.xlu0 %v148, 95
    %v154 = vpop.permute.xlu0 %153
    %vm155 = vcmp.lt.s32.totalorder %v70, 95
    %v156 = vsel %vm155, %v152, %v154
    %v157 = vsel %vm155, %v154, %v152
    %158 = vst [vmem:[#allocation2 + $0x70] sm:$0xf] %v156
    %159 = vst [vmem:[#allocation2 + $0x78] sm:$0xf] %v157
    %160 = vst [vmem:[#allocation1] ss:$2 sm:$0xff] %v51
    %v161 = vld.sshfl [vmem:[#allocation1] sm:$0xff pattern:$0x75316420]
    %v162 = vld.sshfl [vmem:[#allocation1 + $0x8] sm:$0xff pattern:$0x75316420]
    %165 = vrot.lane.b32.xlu0 %v161, 94
    %v166 = vpop.permute.xlu0 %165
    %167 = vrot.lane.b32.xlu0 %v162, 94
    %v168 = vpop.permute.xlu0 %167
    %vm169 = vcmp.lt.s32.totalorder %v70, 94
    %v170 = vsel %vm169, %v166, %v168
    %v171 = vsel %vm169, %v168, %v166
    %172 = vst [vmem:[#allocation2 + $0x80] sm:$0xf] %v170
    %173 = vst [vmem:[#allocation2 + $0x88] sm:$0xf] %v171
    %v174 = vld [vmem:[#allocation2] sm:$0xff]
    %v175 = vld [vmem:[#allocation2 + $0x8] sm:$0xff]
    %v176 = vld [vmem:[#allocation2 + $0x10] sm:$0xff]
    %v177 = vld [vmem:[#allocation2 + $0x18] sm:$0xff]
    %v178 = vld [vmem:[#allocation2 + $0x20] sm:$0xff]
    %v179 = vld [vmem:[#allocation2 + $0x28] sm:$0xff]
    %v180 = vld [vmem:[#allocation2 + $0x30] sm:$0xff]
    %v181 = vld [vmem:[#allocation2 + $0x38] sm:$0xff]
    %v182 = vld [vmem:[#allocation2 + $0x40] sm:$0xff]
    %v183 = vld [vmem:[#allocation2 + $0x48] sm:$0xff]
    %v184 = vld [vmem:[#allocation2 + $0x50] sm:$0xff]
    %v185 = vld [vmem:[#allocation2 + $0x58] sm:$0xff]
    %v186 = vld [vmem:[#allocation2 + $0x60] sm:$0xff]
    %v187 = vld [vmem:[#allocation2 + $0x68] sm:$0xff]
    %v188 = vld [vmem:[#allocation2 + $0x70] sm:$0xff]
    %v189 = vld [vmem:[#allocation2 + $0x78] sm:$0xff]
    %v190 = vld [vmem:[#allocation2 + $0x80] sm:$0xff]
    %v191 = vld [vmem:[#allocation2 + $0x88] sm:$0xff]
    %193 = vset.pattern.permute.xlu0 0
    %194 = vperm.xlu0 %193, %v50
    %v195 = vpop.permute.xlu0 %194
    %vm197 = vcmask 588800
    %v199 = vsel %vm197, %v49, 0
    %201 = vmatpush.msra.mxu0 0.0
    %202 = vmatpush.msra.mxu0 0.0
    %203 = vmatpush.msra.mxu0 0.0
    %204 = vmatpush.msra.mxu0 0.0
    %205 = vmatpush.msra.mxu0 0.0
    %206 = vmatpush.msra.mxu0 0.0
    %207 = vmatpush.msra.mxu0 0.0
    %208 = vmatpush.msra.mxu0 %v190
    %209 = vmatpush.msra.mxu0 %v188
    %210 = vmatpush.msra.mxu0 %v186
    %211 = vmatpush.msra.mxu0 %v184
    %212 = vmatpush.msra.mxu0 %v182
    %213 = vmatpush.msra.mxu0 %v180
    %214 = vmatpush.msra.mxu0 %v178
    %215 = vmatpush.msra.mxu0 %v176
    %216 = vmatpush.msra.mxu0 %v174
    %217 = vmatmul.f32.gmra.mxu0 %v199
    %v218 = vpop.f32.mrf.mxu0
    %v219 = vadd.f32 %v195, %v218
    %220 = vdwg.mxu0
    %221 = vmatpush.msra.mxu0 0.0
    %222 = vmatpush.msra.mxu0 0.0
    %223 = vmatpush.msra.mxu0 0.0
    %224 = vmatpush.msra.mxu0 0.0
    %225 = vmatpush.msra.mxu0 0.0
    %226 = vmatpush.msra.mxu0 0.0
    %227 = vmatpush.msra.mxu0 0.0
    %228 = vmatpush.msra.mxu0 %v191
    %229 = vmatpush.msra.mxu0 %v189
    %230 = vmatpush.msra.mxu0 %v187
    %231 = vmatpush.msra.mxu0 %v185
    %232 = vmatpush.msra.mxu0 %v183
    %233 = vmatpush.msra.mxu0 %v181
    %234 = vmatpush.msra.mxu0 %v179
    %235 = vmatpush.msra.mxu0 %v177
    %236 = vmatpush.msra.mxu0 %v175
    %237 = vmatmul.f32.gmra.mxu0 %v199
    %v238 = vpop.f32.mrf.mxu0
    %v239 = vadd.f32 %v195, %v238
    %240 = vdwg.mxu0
    %241 = vst [vmem:[#allocation6] sm:$0xff] %v219
    %242 = vst [vmem:[#allocation6 + $0x8] sm:$0xff] %v239
    %s243 = scalar_lea.vmem [#allocation3], 8
    %v244 = vld [vmem:[%s243] sm:$0xff]
    %246 = vst [vmem:[#allocation1] ss:$2 sm:$0xff] %v244
    %v247 = vld.sshfl [vmem:[#allocation1] sm:$0xff pattern:$0x75316420]
    %v248 = vld.sshfl [vmem:[#allocation1 + $0x8] sm:$0xff pattern:$0x75316420]
    %251 = vst [vmem:[#allocation2] sm:$0xf] %v247
    %252 = vst [vmem:[#allocation2 + $0x8] sm:$0xf] %v248
    %253 = vst [vmem:[#allocation1] ss:$2 sm:$0xff] %v244
    %v254 = vld.sshfl [vmem:[#allocation1] sm:$0xff pattern:$0x75316420]
    %v255 = vld.sshfl [vmem:[#allocation1 + $0x8] sm:$0xff pattern:$0x75316420]
    %258 = vrot.lane.b32.xlu0 %v254, 127
    %v259 = vpop.permute.xlu0 %258
    %260 = vrot.lane.b32.xlu0 %v255, 127
    %v261 = vpop.permute.xlu0 %260
    %v262 = vsel %vm71, %v259, %v261
    %v263 = vsel %vm71, %v261, %v259
    %264 = vst [vmem:[#allocation2 + $0x10] sm:$0xf] %v262
    %265 = vst [vmem:[#allocation2 + $0x18] sm:$0xf] %v263
    %266 = vst [vmem:[#allocation1] ss:$2 sm:$0xff] %v244
    %v267 = vld.sshfl [vmem:[#allocation1] sm:$0xff pattern:$0x75316420]
    %v268 = vld.sshfl [vmem:[#allocation1 + $0x8] sm:$0xff pattern:$0x75316420]
    %271 = vrot.lane.b32.xlu0 %v267, 126
    %v272 = vpop.permute.xlu0 %271
    %273 = vrot.lane.b32.xlu0 %v268, 126
    %v274 = vpop.permute.xlu0 %273
    %v275 = vsel %vm85, %v272, %v274
    %v276 = vsel %vm85, %v274, %v272
    %277 = vst [vmem:[#allocation2 + $0x20] sm:$0xf] %v275
    %278 = vst [vmem:[#allocation2 + $0x28] sm:$0xf] %v276
    %279 = vst [vmem:[#allocation1] ss:$2 sm:$0xff] %v244
    %v280 = vld.sshfl [vmem:[#allocation1] sm:$0xff pattern:$0x75316420]
    %v281 = vld.sshfl [vmem:[#allocation1 + $0x8] sm:$0xff pattern:$0x75316420]
    %284 = vrot.lane.b32.xlu0 %v280, 112
    %v285 = vpop.permute.xlu0 %284
    %286 = vrot.lane.b32.xlu0 %v281, 112
    %v287 = vpop.permute.xlu0 %286
    %v288 = vsel %vm99, %v285, %v287
    %v289 = vsel %vm99, %v287, %v285
    %290 = vst [vmem:[#allocation2 + $0x30] sm:$0xf] %v288
    %291 = vst [vmem:[#allocation2 + $0x38] sm:$0xf] %v289
    %292 = vst [vmem:[#allocation1] ss:$2 sm:$0xff] %v244
    %v293 = vld.sshfl [vmem:[#allocation1] sm:$0xff pattern:$0x75316420]
    %v294 = vld.sshfl [vmem:[#allocation1 + $0x8] sm:$0xff pattern:$0x75316420]
    %297 = vrot.lane.b32.xlu0 %v293, 111
    %v298 = vpop.permute.xlu0 %297
    %299 = vrot.lane.b32.xlu0 %v294, 111
    %v300 = vpop.permute.xlu0 %299
    %v301 = vsel %vm113, %v298, %v300
    %v302 = vsel %vm113, %v300, %v298
    %303 = vst [vmem:[#allocation2 + $0x40] sm:$0xf] %v301
    %304 = vst [vmem:[#allocation2 + $0x48] sm:$0xf] %v302
    %305 = vst [vmem:[#allocation1] ss:$2 sm:$0xff] %v244
    %v306 = vld.sshfl [vmem:[#allocation1] sm:$0xff pattern:$0x75316420]
    %v307 = vld.sshfl [vmem:[#allocation1 + $0x8] sm:$0xff pattern:$0x75316420]
    %310 = vrot.lane.b32.xlu0 %v306, 110
    %v311 = vpop.permute.xlu0 %310
    %312 = vrot.lane.b32.xlu0 %v307, 110
    %v313 = vpop.permute.xlu0 %312
    %v314 = vsel %vm127, %v311, %v313
    %v315 = vsel %vm127, %v313, %v311
    %316 = vst [vmem:[#allocation2 + $0x50] sm:$0xf] %v314
    %317 = vst [vmem:[#allocation2 + $0x58] sm:$0xf] %v315
    %318 = vst [vmem:[#allocation1] ss:$2 sm:$0xff] %v244
    %v319 = vld.sshfl [vmem:[#allocation1] sm:$0xff pattern:$0x75316420]
    %v320 = vld.sshfl [vmem:[#allocation1 + $0x8] sm:$0xff pattern:$0x75316420]
    %323 = vrot.lane.b32.xlu0 %v319, 96
    %v324 = vpop.permute.xlu0 %323
    %325 = vrot.lane.b32.xlu0 %v320, 96
    %v326 = vpop.permute.xlu0 %325
    %v327 = vsel %vm141, %v324, %v326
    %v328 = vsel %vm141, %v326, %v324
    %329 = vst [vmem:[#allocation2 + $0x60] sm:$0xf] %v327
    %330 = vst [vmem:[#allocation2 + $0x68] sm:$0xf] %v328
    %331 = vst [vmem:[#allocation1] ss:$2 sm:$0xff] %v244
    %v332 = vld.sshfl [vmem:[#allocation1] sm:$0xff pattern:$0x75316420]
    %v333 = vld.sshfl [vmem:[#allocation1 + $0x8] sm:$0xff pattern:$0x75316420]
    %336 = vrot.lane.b32.xlu0 %v332, 95
    %v337 = vpop.permute.xlu0 %336
    %338 = vrot.lane.b32.xlu0 %v333, 95
    %v339 = vpop.permute.xlu0 %338
    %v340 = vsel %vm155, %v337, %v339
    %v341 = vsel %vm155, %v339, %v337
    %342 = vst [vmem:[#allocation2 + $0x70] sm:$0xf] %v340
    %343 = vst [vmem:[#allocation2 + $0x78] sm:$0xf] %v341
    %344 = vst [vmem:[#allocation1] ss:$2 sm:$0xff] %v244
    %v345 = vld.sshfl [vmem:[#allocation1] sm:$0xff pattern:$0x75316420]
    %v346 = vld.sshfl [vmem:[#allocation1 + $0x8] sm:$0xff pattern:$0x75316420]
    %349 = vrot.lane.b32.xlu0 %v345, 94
    %v350 = vpop.permute.xlu0 %349
    %351 = vrot.lane.b32.xlu0 %v346, 94
    %v352 = vpop.permute.xlu0 %351
    %v353 = vsel %vm169, %v350, %v352
    %v354 = vsel %vm169, %v352, %v350
    %355 = vst [vmem:[#allocation2 + $0x80] sm:$0xf] %v353
    %356 = vst [vmem:[#allocation2 + $0x88] sm:$0xf] %v354
    %v357 = vld [vmem:[#allocation2] sm:$0xff]
    %v358 = vld [vmem:[#allocation2 + $0x8] sm:$0xff]
    %v359 = vld [vmem:[#allocation2 + $0x10] sm:$0xff]
    %v360 = vld [vmem:[#allocation2 + $0x18] sm:$0xff]
    %v361 = vld [vmem:[#allocation2 + $0x20] sm:$0xff]
    %v362 = vld [vmem:[#allocation2 + $0x28] sm:$0xff]
    %v363 = vld [vmem:[#allocation2 + $0x30] sm:$0xff]
    %v364 = vld [vmem:[#allocation2 + $0x38] sm:$0xff]
    %v365 = vld [vmem:[#allocation2 + $0x40] sm:$0xff]
    %v366 = vld [vmem:[#allocation2 + $0x48] sm:$0xff]
    %v367 = vld [vmem:[#allocation2 + $0x50] sm:$0xff]
    %v368 = vld [vmem:[#allocation2 + $0x58] sm:$0xff]
    %v369 = vld [vmem:[#allocation2 + $0x60] sm:$0xff]
    %v370 = vld [vmem:[#allocation2 + $0x68] sm:$0xff]
    %v371 = vld [vmem:[#allocation2 + $0x70] sm:$0xff]
    %v372 = vld [vmem:[#allocation2 + $0x78] sm:$0xff]
    %v373 = vld [vmem:[#allocation2 + $0x80] sm:$0xff]
    %v374 = vld [vmem:[#allocation2 + $0x88] sm:$0xff]
    %375 = vmatpush.msra.mxu0 0.0
    %376 = vmatpush.msra.mxu0 0.0
    %377 = vmatpush.msra.mxu0 0.0
    %378 = vmatpush.msra.mxu0 0.0
    %379 = vmatpush.msra.mxu0 0.0
    %380 = vmatpush.msra.mxu0 0.0
    %381 = vmatpush.msra.mxu0 0.0
    %382 = vmatpush.msra.mxu0 %v373
    %383 = vmatpush.msra.mxu0 %v371
    %384 = vmatpush.msra.mxu0 %v369
    %385 = vmatpush.msra.mxu0 %v367
    %386 = vmatpush.msra.mxu0 %v365
    %387 = vmatpush.msra.mxu0 %v363
    %388 = vmatpush.msra.mxu0 %v361
    %389 = vmatpush.msra.mxu0 %v359
    %390 = vmatpush.msra.mxu0 %v357
    %391 = vmatmul.f32.gmra.mxu0 %v199
    %v392 = vpop.f32.mrf.mxu0
    %v393 = vadd.f32 %v195, %v392
    %394 = vdwg.mxu0
    %395 = vmatpush.msra.mxu0 0.0
    %396 = vmatpush.msra.mxu0 0.0
    %397 = vmatpush.msra.mxu0 0.0
    %398 = vmatpush.msra.mxu0 0.0
    %399 = vmatpush.msra.mxu0 0.0
    %400 = vmatpush.msra.mxu0 0.0
    %401 = vmatpush.msra.mxu0 0.0
    %402 = vmatpush.msra.mxu0 %v374
    %403 = vmatpush.msra.mxu0 %v372
    %404 = vmatpush.msra.mxu0 %v370
    %405 = vmatpush.msra.mxu0 %v368
    %406 = vmatpush.msra.mxu0 %v366
    %407 = vmatpush.msra.mxu0 %v364
    %408 = vmatpush.msra.mxu0 %v362
    %409 = vmatpush.msra.mxu0 %v360
    %410 = vmatpush.msra.mxu0 %v358
    %411 = vmatmul.f32.gmra.mxu0 %v199
    %v412 = vpop.f32.mrf.mxu0
    %v413 = vadd.f32 %v195, %v412
    %414 = vdwg.mxu0
    %s415 = scalar_lea.vmem [#allocation6], 16
    %416 = vst [vmem:[%s415] sm:$0xff] %v393
    %417 = vst [vmem:[%s415 + $0x8] sm:$0xff] %v413
    // Predicated region
    $region18: #{tpu_custom_call.1} parent=1 // pred_check
      _
    $region19: #{tpu_custom_call.1} parent=1 // pred_check_branch
      %419 = sbr.rel (0) target = $region21
    $region20: #{tpu_custom_call.1} parent=1 // pred_region
      %421 = vsyncadd [#allocation5], 0
      %s422 = sshll.u32 [#allocation6], 4
      %s423 = int_to_ptr.vmem [resolvable:$true] %s422
      %s424 = sshll.u32 %s3, 4
      %s425 = int_to_ptr.hbm [resolvable:$true] %s424
      %430 = dma.vmem_to_hbm [thread:$0]  %s423, 512, %s425, [#allocation5], 256, 256, 16
    $region21: #{tpu_custom_call.1} parent=1 // pred_fallthru
      _
    // Predicated region
    $region22: #{tpu_custom_call.1} parent=1 // pred_check
      _
    $region23: #{tpu_custom_call.1} parent=1 // pred_check_branch
      %432 = sbr.rel (0) target = $region25
    $region24: #{tpu_custom_call.1} parent=1 // pred_region
      %434 = dma.done [#allocation5], 512
    $region25: #{tpu_custom_call.1} parent=1 // pred_fallthru
      _
    %435 = vsyncpa [#allocation4], 1
    %436 = vsyncpa [#allocation5], 1

</llo_original>
